<compile_context>
chip_gen: v6e
topology: v6e:2x2x1
jax: 0.10.0
libtpu: 0.0.40
codegen_flags: <defaults>
</compile_context>

<pallas_src>
import functools

import jax
import jax.numpy as jnp
from jax.experimental import pallas as pl
from jax.experimental.pallas import tpu as pltpu

TEMPERATURE = 0.2  # CL_feat(temperature=0.2)


def _cl_feat_kernel(anchor_ref, pos_ref, neg_ref, out_ref, *,
                    inv_temperature, batch):
    # anchor_ref/pos_ref: [tb, H, D]   neg_ref: [tb, N, H, D]
    # out_ref: [1, 8, 128]  (per-tile partial loss sum, broadcast)
    tb, H, D = anchor_ref.shape
    N = neg_ref.shape[1]

    anchor = anchor_ref[...]          # [tb, H, D], input dtype
    pos = pos_ref[...]                # [tb, H, D]

    loss_acc = jnp.zeros((tb, 1), jnp.float32)
    for h in range(H):                # H == 4, short static loop
        a_h = anchor[:, h, :]                  # [tb, D]
        p_h = pos[:, h, :]                     # [tb, D]
        n_h = neg_ref[:, :, h, :]              # [tb, N, D]

        # scores vs. negatives: batched contraction over D, f32 accumulate
        # (== einsum 'bqd,bkd->bqk' with q == 1)
        s_neg = jax.lax.dot_general(
            a_h[:, None, :], n_h,
            dimension_numbers=(((2,), (2,)), ((0,), (0,))),
            preferred_element_type=jnp.float32)[:, 0, :]     # [tb, N]
        # score vs. positive (candidate 0): tiny [tb, D] f32 mult + lane reduce
        s_pos = jnp.sum(a_h.astype(jnp.float32) * p_h.astype(jnp.float32),
                        axis=-1, keepdims=True)              # [tb, 1]

        # 1/T as compile-time constant multiply (no per-element divide)
        s_neg = s_neg * inv_temperature
        s_pos = s_pos * inv_temperature

        # cross entropy with label 0 (pos is candidate 0), max-subtracted
        m = jnp.maximum(jnp.max(s_neg, axis=-1, keepdims=True), s_pos)  # [tb,1]
        e_pos = jnp.exp(s_pos - m)                                      # [tb,1]
        e_neg = jnp.sum(jnp.exp(s_neg - m), axis=-1, keepdims=True)     # [tb,1]
        loss_acc = loss_acc + (jnp.log(e_pos + e_neg) - (s_pos - m))    # [tb,1]

    # mask padded rows of a partial last batch tile
    row = pl.program_id(0) * tb + jax.lax.broadcasted_iota(jnp.int32, (tb, 1), 0)
    loss_acc = jnp.where(row < batch, loss_acc, 0.0)

    partial = jnp.sum(loss_acc)
    out_ref[...] = jnp.broadcast_to(partial, out_ref.shape).astype(out_ref.dtype)


def cl_feat_loss(anchor, pos, neg, temperature=TEMPERATURE, block_b=None):
    """anchor/pos: [B, 4, D]; neg: [B, 4, D] or [B, N, 4, D]. Returns scalar loss."""
    if neg.ndim == 3:
        neg = neg[:, None]                        # [B, 1, H, D]  (free expand)
    B, H, D = anchor.shape
    N = neg.shape[1]
    assert pos.shape == (B, H, D) and neg.shape == (B, N, H, D)

    itemsize = jnp.dtype(anchor.dtype).itemsize

    # Pick a batch tile that keeps double-buffered inputs well inside VMEM
    # (budget ~4 MiB per in-flight copy -> fits v7x's 64 MiB physical VMEM).
    if block_b is None:
        row_bytes = (2 * H * D + N * H * D) * itemsize
        block_b = max(1, min(B, (4 << 20) // max(row_bytes, 1)))
        if block_b >= 8:
            block_b = (block_b // 8) * 8
    num_tiles = pl.cdiv(B, block_b)

    kernel = functools.partial(
        _cl_feat_kernel,
        inv_temperature=float(1.0 / temperature),
        batch=B)

    flops = 2 * B * H * (N + 1) * D
    bytes_accessed = (anchor.size + pos.size + neg.size) * itemsize \
        + num_tiles * 8 * 128 * 4
    cost = pl.CostEstimate(flops=flops,
                           transcendentals=B * H * (N + 1),
                           bytes_accessed=bytes_accessed)

    partials = pl.pallas_call(
        kernel,
        out_shape=jax.ShapeDtypeStruct((num_tiles, 8, 128), jnp.float32),
        grid=(num_tiles,),
        in_specs=[
            pl.BlockSpec((block_b, H, D), lambda i: (i, 0, 0)),
            pl.BlockSpec((block_b, H, D), lambda i: (i, 0, 0)),
            pl.BlockSpec((block_b, N, H, D), lambda i: (i, 0, 0, 0)),
        ],
        out_specs=pl.BlockSpec((1, 8, 128), lambda i: (i, 0, 0)),
        compiler_params=pltpu.CompilerParams(
            dimension_semantics=("parallel",),
            vmem_limit_bytes=48 * 1024 * 1024),
        cost_estimate=cost,
    )(anchor, pos, neg)

    # mean over batch and over the 4 heads
    return jnp.sum(partials[:, 0, 0]) / (B * H)


def _reference(anchor, pos, neg, temperature):
    """Pure-JAX replica of the PyTorch forward, for verification."""
    if neg.ndim == 3:
        neg = neg[:, None]
    features = jnp.concatenate([pos[:, None], neg], axis=1)  # [B, K, 4, D]
    losses = []
    for i in range(4):
        a = anchor[:, i, :]                                   # [B, D]
        f = features[:, :, i, :]                              # [B, K, D]
        logits = jnp.einsum("bd,bkd->bk", a, f) / temperature
        logits = logits - jnp.max(logits, axis=-1, keepdims=True)
        lse = jax.scipy.special.logsumexp(logits, axis=-1)
        losses.append(jnp.mean(lse - logits[:, 0]))           # label == 0
    return sum(losses) / len(losses)


if __name__ == "__main__":
    key = jax.random.PRNGKey(0)
    k1, k2, k3, k4 = jax.random.split(key, 4)

    B, H, D, N = 2, 4, 32, 3
    anchor = jax.random.normal(k1, (B, H, D), dtype=jnp.float32)
    pos = jax.random.normal(k2, (B, H, D), dtype=jnp.float32)
    neg = jax.random.normal(k3, (B, N, H, D), dtype=jnp.float32)

    # 4-D neg path
    loss = cl_feat_loss(anchor, pos, neg)
    jax.block_until_ready(loss)
    ref = _reference(anchor, pos, neg, TEMPERATURE)
    assert jnp.allclose(loss, ref, atol=1e-5, rtol=1e-5), (loss, ref)

    # 3-D neg path (single negative)
    neg3 = jax.random.normal(k4, (B, H, D), dtype=jnp.float32)
    loss3 = cl_feat_loss(anchor, pos, neg3)
    jax.block_until_ready(loss3)
    ref3 = _reference(anchor, pos, neg3, TEMPERATURE)
    assert jnp.allclose(loss3, ref3, atol=1e-5, rtol=1e-5), (loss3, ref3)

    print("KERNEL_OK")
</pallas_src>

<mosaic_0001>
module attributes {stable_mosaic.version = 11 : i64} {
  func.func @_cl_feat_kernel(%arg0: i32, %arg1: memref<2x4x32xf32, #tpu.memory_space<vmem>>, %arg2: memref<2x4x32xf32, #tpu.memory_space<vmem>>, %arg3: memref<2x3x4x32xf32, #tpu.memory_space<vmem>>, %arg4: memref<1x8x128xf32, #tpu.memory_space<vmem>>) attributes {dimension_semantics = [#tpu.dimension_semantics<parallel>], iteration_bounds = array<i64: 1>, scalar_prefetch = 0 : i64, scratch_operands = 0 : i64, tpu.core_type = #tpu.core_type<tc>, window_params = [{transform_indices = @transform_0, window_bounds = array<i64: 2, 4, 32>}, {transform_indices = @transform_1, window_bounds = array<i64: 2, 4, 32>}, {transform_indices = @transform_2, window_bounds = array<i64: 2, 3, 4, 32>}, {transform_indices = @transform_3, window_bounds = array<i64: 1, 8, 128>}]} {
    %c0 = arith.constant 0 : index
    %c0_0 = arith.constant 0 : index
    %c0_1 = arith.constant 0 : index
    %0 = vector.load %arg1[%c0, %c0_0, %c0_1] : memref<2x4x32xf32, #tpu.memory_space<vmem>>, vector<2x4x32xf32>
    %c0_2 = arith.constant 0 : index
    %c0_3 = arith.constant 0 : index
    %c0_4 = arith.constant 0 : index
    %1 = vector.load %arg2[%c0_2, %c0_3, %c0_4] : memref<2x4x32xf32, #tpu.memory_space<vmem>>, vector<2x4x32xf32>
    %cst = arith.constant 0.000000e+00 : f32
    %2 = vector.broadcast %cst : f32 to vector<2x1xf32>
    %3 = vector.extract_strided_slice %0 {offsets = [0, 0, 0], sizes = [2, 1, 32], strides = [1, 1, 1]} : vector<2x4x32xf32> to vector<2x1x32xf32>
    %4 = vector.shape_cast %3 : vector<2x1x32xf32> to vector<2x32xf32>
    %5 = vector.extract_strided_slice %1 {offsets = [0, 0, 0], sizes = [2, 1, 32], strides = [1, 1, 1]} : vector<2x4x32xf32> to vector<2x1x32xf32>
    %6 = vector.shape_cast %5 : vector<2x1x32xf32> to vector<2x32xf32>
    %c0_5 = arith.constant 0 : index
    %c0_6 = arith.constant 0 : index
    %c0_7 = arith.constant 0 : index
    %c0_8 = arith.constant 0 : index
    %7 = vector.load %arg3[%c0_5, %c0_6, %c0_7, %c0_8] : memref<2x3x4x32xf32, #tpu.memory_space<vmem>>, vector<2x3x1x32xf32>
    %8 = vector.shape_cast %7 : vector<2x3x1x32xf32> to vector<2x3x32xf32>
    %9 = vector.shape_cast %4 : vector<2x32xf32> to vector<2x1x32xf32>
    %cst_9 = arith.constant dense<0.000000e+00> : vector<2x1x3xf32>
    %10 = tpu.matmul %9, %8, %cst_9 {dimension_numbers = #tpu.dot_dimension_numbers<[2], [2], [1], [1], [0, 0, 0, 1, 1, 1], [0], [0]>} : vector<2x1x32xf32>, vector<2x3x32xf32>, vector<2x1x3xf32> -> vector<2x1x3xf32>
    %11 = vector.shape_cast %10 : vector<2x1x3xf32> to vector<2x3xf32>
    %12 = arith.mulf %4, %6 : vector<2x32xf32>
    %cst_10 = arith.constant dense<0.000000e+00> : vector<2xf32>
    %13 = vector.multi_reduction <add>, %12, %cst_10 [1] : vector<2x32xf32> to vector<2xf32>
    %14 = vector.shape_cast %13 : vector<2xf32> to vector<2x1xf32>
    %cst_11 = arith.constant 5.000000e+00 : f32
    %15 = vector.broadcast %cst_11 : f32 to vector<2x3xf32>
    %16 = arith.mulf %11, %15 : vector<2x3xf32>
    %cst_12 = arith.constant 5.000000e+00 : f32
    %17 = vector.broadcast %cst_12 : f32 to vector<2x1xf32>
    %18 = arith.mulf %14, %17 : vector<2x1xf32>
    %cst_13 = arith.constant dense<0xFF800000> : vector<2xf32>
    %19 = vector.multi_reduction <maximumf>, %16, %cst_13 [1] : vector<2x3xf32> to vector<2xf32>
    %20 = vector.shape_cast %19 : vector<2xf32> to vector<2x1xf32>
    %21 = arith.maximumf %20, %18 : vector<2x1xf32>
    %22 = arith.subf %18, %21 : vector<2x1xf32>
    %23 = math.exp %22 : vector<2x1xf32>
    %24 = vector.broadcast %21 : vector<2x1xf32> to vector<2x3xf32>
    %25 = arith.subf %16, %24 : vector<2x3xf32>
    %26 = math.exp %25 : vector<2x3xf32>
    %cst_14 = arith.constant dense<0.000000e+00> : vector<2xf32>
    %27 = vector.multi_reduction <add>, %26, %cst_14 [1] : vector<2x3xf32> to vector<2xf32>
    %28 = vector.shape_cast %27 : vector<2xf32> to vector<2x1xf32>
    %29 = arith.addf %23, %28 : vector<2x1xf32>
    %30 = math.log %29 : vector<2x1xf32>
    %31 = arith.subf %18, %21 : vector<2x1xf32>
    %32 = arith.subf %30, %31 : vector<2x1xf32>
    %33 = arith.addf %2, %32 : vector<2x1xf32>
    %34 = vector.extract_strided_slice %0 {offsets = [0, 1, 0], sizes = [2, 1, 32], strides = [1, 1, 1]} : vector<2x4x32xf32> to vector<2x1x32xf32>
    %35 = vector.shape_cast %34 : vector<2x1x32xf32> to vector<2x32xf32>
    %36 = vector.extract_strided_slice %1 {offsets = [0, 1, 0], sizes = [2, 1, 32], strides = [1, 1, 1]} : vector<2x4x32xf32> to vector<2x1x32xf32>
    %37 = vector.shape_cast %36 : vector<2x1x32xf32> to vector<2x32xf32>
    %c0_15 = arith.constant 0 : index
    %c0_16 = arith.constant 0 : index
    %c1 = arith.constant 1 : index
    %c0_17 = arith.constant 0 : index
    %38 = vector.load %arg3[%c0_15, %c0_16, %c1, %c0_17] : memref<2x3x4x32xf32, #tpu.memory_space<vmem>>, vector<2x3x1x32xf32>
    %39 = vector.shape_cast %38 : vector<2x3x1x32xf32> to vector<2x3x32xf32>
    %40 = vector.shape_cast %35 : vector<2x32xf32> to vector<2x1x32xf32>
    %cst_18 = arith.constant dense<0.000000e+00> : vector<2x1x3xf32>
    %41 = tpu.matmul %40, %39, %cst_18 {dimension_numbers = #tpu.dot_dimension_numbers<[2], [2], [1], [1], [0, 0, 0, 1, 1, 1], [0], [0]>} : vector<2x1x32xf32>, vector<2x3x32xf32>, vector<2x1x3xf32> -> vector<2x1x3xf32>
    %42 = vector.shape_cast %41 : vector<2x1x3xf32> to vector<2x3xf32>
    %43 = arith.mulf %35, %37 : vector<2x32xf32>
    %cst_19 = arith.constant dense<0.000000e+00> : vector<2xf32>
    %44 = vector.multi_reduction <add>, %43, %cst_19 [1] : vector<2x32xf32> to vector<2xf32>
    %45 = vector.shape_cast %44 : vector<2xf32> to vector<2x1xf32>
    %cst_20 = arith.constant 5.000000e+00 : f32
    %46 = vector.broadcast %cst_20 : f32 to vector<2x3xf32>
    %47 = arith.mulf %42, %46 : vector<2x3xf32>
    %cst_21 = arith.constant 5.000000e+00 : f32
    %48 = vector.broadcast %cst_21 : f32 to vector<2x1xf32>
    %49 = arith.mulf %45, %48 : vector<2x1xf32>
    %cst_22 = arith.constant dense<0xFF800000> : vector<2xf32>
    %50 = vector.multi_reduction <maximumf>, %47, %cst_22 [1] : vector<2x3xf32> to vector<2xf32>
    %51 = vector.shape_cast %50 : vector<2xf32> to vector<2x1xf32>
    %52 = arith.maximumf %51, %49 : vector<2x1xf32>
    %53 = arith.subf %49, %52 : vector<2x1xf32>
    %54 = math.exp %53 : vector<2x1xf32>
    %55 = vector.broadcast %52 : vector<2x1xf32> to vector<2x3xf32>
    %56 = arith.subf %47, %55 : vector<2x3xf32>
    %57 = math.exp %56 : vector<2x3xf32>
    %cst_23 = arith.constant dense<0.000000e+00> : vector<2xf32>
    %58 = vector.multi_reduction <add>, %57, %cst_23 [1] : vector<2x3xf32> to vector<2xf32>
    %59 = vector.shape_cast %58 : vector<2xf32> to vector<2x1xf32>
    %60 = arith.addf %54, %59 : vector<2x1xf32>
    %61 = math.log %60 : vector<2x1xf32>
    %62 = arith.subf %49, %52 : vector<2x1xf32>
    %63 = arith.subf %61, %62 : vector<2x1xf32>
    %64 = arith.addf %33, %63 : vector<2x1xf32>
    %65 = vector.extract_strided_slice %0 {offsets = [0, 2, 0], sizes = [2, 1, 32], strides = [1, 1, 1]} : vector<2x4x32xf32> to vector<2x1x32xf32>
    %66 = vector.shape_cast %65 : vector<2x1x32xf32> to vector<2x32xf32>
    %67 = vector.extract_strided_slice %1 {offsets = [0, 2, 0], sizes = [2, 1, 32], strides = [1, 1, 1]} : vector<2x4x32xf32> to vector<2x1x32xf32>
    %68 = vector.shape_cast %67 : vector<2x1x32xf32> to vector<2x32xf32>
    %c0_24 = arith.constant 0 : index
    %c0_25 = arith.constant 0 : index
    %c2 = arith.constant 2 : index
    %c0_26 = arith.constant 0 : index
    %69 = vector.load %arg3[%c0_24, %c0_25, %c2, %c0_26] : memref<2x3x4x32xf32, #tpu.memory_space<vmem>>, vector<2x3x1x32xf32>
    %70 = vector.shape_cast %69 : vector<2x3x1x32xf32> to vector<2x3x32xf32>
    %71 = vector.shape_cast %66 : vector<2x32xf32> to vector<2x1x32xf32>
    %cst_27 = arith.constant dense<0.000000e+00> : vector<2x1x3xf32>
    %72 = tpu.matmul %71, %70, %cst_27 {dimension_numbers = #tpu.dot_dimension_numbers<[2], [2], [1], [1], [0, 0, 0, 1, 1, 1], [0], [0]>} : vector<2x1x32xf32>, vector<2x3x32xf32>, vector<2x1x3xf32> -> vector<2x1x3xf32>
    %73 = vector.shape_cast %72 : vector<2x1x3xf32> to vector<2x3xf32>
    %74 = arith.mulf %66, %68 : vector<2x32xf32>
    %cst_28 = arith.constant dense<0.000000e+00> : vector<2xf32>
    %75 = vector.multi_reduction <add>, %74, %cst_28 [1] : vector<2x32xf32> to vector<2xf32>
    %76 = vector.shape_cast %75 : vector<2xf32> to vector<2x1xf32>
    %cst_29 = arith.constant 5.000000e+00 : f32
    %77 = vector.broadcast %cst_29 : f32 to vector<2x3xf32>
    %78 = arith.mulf %73, %77 : vector<2x3xf32>
    %cst_30 = arith.constant 5.000000e+00 : f32
    %79 = vector.broadcast %cst_30 : f32 to vector<2x1xf32>
    %80 = arith.mulf %76, %79 : vector<2x1xf32>
    %cst_31 = arith.constant dense<0xFF800000> : vector<2xf32>
    %81 = vector.multi_reduction <maximumf>, %78, %cst_31 [1] : vector<2x3xf32> to vector<2xf32>
    %82 = vector.shape_cast %81 : vector<2xf32> to vector<2x1xf32>
    %83 = arith.maximumf %82, %80 : vector<2x1xf32>
    %84 = arith.subf %80, %83 : vector<2x1xf32>
    %85 = math.exp %84 : vector<2x1xf32>
    %86 = vector.broadcast %83 : vector<2x1xf32> to vector<2x3xf32>
    %87 = arith.subf %78, %86 : vector<2x3xf32>
    %88 = math.exp %87 : vector<2x3xf32>
    %cst_32 = arith.constant dense<0.000000e+00> : vector<2xf32>
    %89 = vector.multi_reduction <add>, %88, %cst_32 [1] : vector<2x3xf32> to vector<2xf32>
    %90 = vector.shape_cast %89 : vector<2xf32> to vector<2x1xf32>
    %91 = arith.addf %85, %90 : vector<2x1xf32>
    %92 = math.log %91 : vector<2x1xf32>
    %93 = arith.subf %80, %83 : vector<2x1xf32>
    %94 = arith.subf %92, %93 : vector<2x1xf32>
    %95 = arith.addf %64, %94 : vector<2x1xf32>
    %96 = vector.extract_strided_slice %0 {offsets = [0, 3, 0], sizes = [2, 1, 32], strides = [1, 1, 1]} : vector<2x4x32xf32> to vector<2x1x32xf32>
    %97 = vector.shape_cast %96 : vector<2x1x32xf32> to vector<2x32xf32>
    %98 = vector.extract_strided_slice %1 {offsets = [0, 3, 0], sizes = [2, 1, 32], strides = [1, 1, 1]} : vector<2x4x32xf32> to vector<2x1x32xf32>
    %99 = vector.shape_cast %98 : vector<2x1x32xf32> to vector<2x32xf32>
    %c0_33 = arith.constant 0 : index
    %c0_34 = arith.constant 0 : index
    %c3 = arith.constant 3 : index
    %c0_35 = arith.constant 0 : index
    %100 = vector.load %arg3[%c0_33, %c0_34, %c3, %c0_35] : memref<2x3x4x32xf32, #tpu.memory_space<vmem>>, vector<2x3x1x32xf32>
    %101 = vector.shape_cast %100 : vector<2x3x1x32xf32> to vector<2x3x32xf32>
    %102 = vector.shape_cast %97 : vector<2x32xf32> to vector<2x1x32xf32>
    %cst_36 = arith.constant dense<0.000000e+00> : vector<2x1x3xf32>
    %103 = tpu.matmul %102, %101, %cst_36 {dimension_numbers = #tpu.dot_dimension_numbers<[2], [2], [1], [1], [0, 0, 0, 1, 1, 1], [0], [0]>} : vector<2x1x32xf32>, vector<2x3x32xf32>, vector<2x1x3xf32> -> vector<2x1x3xf32>
    %104 = vector.shape_cast %103 : vector<2x1x3xf32> to vector<2x3xf32>
    %105 = arith.mulf %97, %99 : vector<2x32xf32>
    %cst_37 = arith.constant dense<0.000000e+00> : vector<2xf32>
    %106 = vector.multi_reduction <add>, %105, %cst_37 [1] : vector<2x32xf32> to vector<2xf32>
    %107 = vector.shape_cast %106 : vector<2xf32> to vector<2x1xf32>
    %cst_38 = arith.constant 5.000000e+00 : f32
    %108 = vector.broadcast %cst_38 : f32 to vector<2x3xf32>
    %109 = arith.mulf %104, %108 : vector<2x3xf32>
    %cst_39 = arith.constant 5.000000e+00 : f32
    %110 = vector.broadcast %cst_39 : f32 to vector<2x1xf32>
    %111 = arith.mulf %107, %110 : vector<2x1xf32>
    %cst_40 = arith.constant dense<0xFF800000> : vector<2xf32>
    %112 = vector.multi_reduction <maximumf>, %109, %cst_40 [1] : vector<2x3xf32> to vector<2xf32>
    %113 = vector.shape_cast %112 : vector<2xf32> to vector<2x1xf32>
    %114 = arith.maximumf %113, %111 : vector<2x1xf32>
    %115 = arith.subf %111, %114 : vector<2x1xf32>
    %116 = math.exp %115 : vector<2x1xf32>
    %117 = vector.broadcast %114 : vector<2x1xf32> to vector<2x3xf32>
    %118 = arith.subf %109, %117 : vector<2x3xf32>
    %119 = math.exp %118 : vector<2x3xf32>
    %cst_41 = arith.constant dense<0.000000e+00> : vector<2xf32>
    %120 = vector.multi_reduction <add>, %119, %cst_41 [1] : vector<2x3xf32> to vector<2xf32>
    %121 = vector.shape_cast %120 : vector<2xf32> to vector<2x1xf32>
    %122 = arith.addf %116, %121 : vector<2x1xf32>
    %123 = math.log %122 : vector<2x1xf32>
    %124 = arith.subf %111, %114 : vector<2x1xf32>
    %125 = arith.subf %123, %124 : vector<2x1xf32>
    %126 = arith.addf %95, %125 : vector<2x1xf32>
    %c2_i32 = arith.constant 2 : i32
    %127 = arith.muli %arg0, %c2_i32 : i32
    %128 = tpu.iota {dimensions = array<i32: 0>} : vector<2x1xi32>
    %129 = vector.broadcast %127 : i32 to vector<2x1xi32>
    %130 = arith.addi %129, %128 : vector<2x1xi32>
    %c2_i32_42 = arith.constant 2 : i32
    %131 = vector.broadcast %c2_i32_42 : i32 to vector<2x1xi32>
    %132 = arith.cmpi slt, %130, %131 : vector<2x1xi32>
    %cst_43 = arith.constant 0.000000e+00 : f32
    %133 = vector.broadcast %cst_43 : f32 to vector<2x1xf32>
    %134 = arith.select %132, %126, %133 : vector<2x1xi1>, vector<2x1xf32>
    %135 = vector.shape_cast %134 : vector<2x1xf32> to vector<1x2x1xf32>
    %cst_44 = arith.constant dense<0.000000e+00> : vector<1xf32>
    %136 = vector.multi_reduction <add>, %135, %cst_44 [1, 2] : vector<1x2x1xf32> to vector<1xf32>
    %137 = vector.shape_cast %136 : vector<1xf32> to vector<1x1x1xf32>
    %138 = vector.extract %137[0, 0, 0] : f32 from vector<1x1x1xf32>
    %139 = vector.broadcast %138 : f32 to vector<1x8x128xf32>
    %c0_45 = arith.constant 0 : index
    %c0_46 = arith.constant 0 : index
    %c0_47 = arith.constant 0 : index
    %140 = vector.load %arg4[%c0_45, %c0_46, %c0_47] : memref<1x8x128xf32, #tpu.memory_space<vmem>>, vector<1x8x128xf32>
    tpu.vector_store %arg4[%c0_45, %c0_46, %c0_47], %139 {strides = array<i32>} : memref<1x8x128xf32, #tpu.memory_space<vmem>>, vector<1x8x128xf32>,
    return
  }
  func.func @transform_0(%arg0: i32) -> (i32, i32, i32) {
    %c0_i32 = arith.constant 0 : i32
    %c0_i32_0 = arith.constant 0 : i32
    %c0_i32_1 = arith.constant 0 : i32
    return %arg0, %c0_i32, %c0_i32_0 : i32, i32, i32
  }
  func.func @transform_1(%arg0: i32) -> (i32, i32, i32) {
    %c0_i32 = arith.constant 0 : i32
    %c0_i32_0 = arith.constant 0 : i32
    %c0_i32_1 = arith.constant 0 : i32
    return %arg0, %c0_i32, %c0_i32_0 : i32, i32, i32
  }
  func.func @transform_2(%arg0: i32) -> (i32, i32, i32, i32) {
    %c0_i32 = arith.constant 0 : i32
    %c0_i32_0 = arith.constant 0 : i32
    %c0_i32_1 = arith.constant 0 : i32
    %c0_i32_2 = arith.constant 0 : i32
    return %arg0, %c0_i32, %c0_i32_0, %c0_i32_1 : i32, i32, i32, i32
  }
  func.func @transform_3(%arg0: i32) -> (i32, i32, i32) {
    %c0_i32 = arith.constant 0 : i32
    %c0_i32_0 = arith.constant 0 : i32
    %c0_i32_1 = arith.constant 0 : i32
    return %arg0, %c0_i32, %c0_i32_0 : i32, i32, i32
  }
}

</mosaic_0001>

<llo_original>
// kernel: tpu_custom_call.1
$region0: #{tpu_custom_call.1}
  #allocation0 [shape = 'u32[]', space=smem, size = 0x4, offset = 0x4, fixed_abs, tag = 'smem constant byte address 0x4 - core index']
  #allocation1 [shape = 'u32[144,128]{1,0:T(1,128)}', space=vmem, size = 0x12000, scoped, tag = 'internal scratch']
  %s0 = inlined_call_operand.hbm [shape: f32[2,4,32], index: 0, kind: input, shape index: {}]
  %s1 = inlined_call_operand.hbm [shape: f32[2,4,32], index: 1, kind: input, shape index: {}]
  %s2 = inlined_call_operand.hbm [shape: f32[2,3,4,32], index: 2, kind: input, shape index: {}]
  %s3 = inlined_call_operand.hbm [shape: f32[1,8,128], index: 3, kind: output, shape index: {}]
  %s4 = sld [smem:[#allocation0]]
  $region34: #{tpu_custom_call.1} parent=0
    _
  %s6 = ssub.s32 1, %s4
  %s7 = scalar_select 0, %s6, %s4
  $region1: #{tpu_custom_call.1} parent=0
    #allocation2 [shape = 'u8[4096]{0}', space=vmem, size = 0x1000, scoped, tag = 'input window, operand 0, single buffered']
    #allocation3 [shape = 's32[1]{0}', space=sflag, size = 0x4, scoped, tag = 'scoped memory for tpu_custom_call.1']
    #allocation4 [shape = 's32[1]{0}', space=sflag, size = 0x4, scoped, tag = 'scoped memory for tpu_custom_call.1']
    #allocation5 [shape = 'u8[4096]{0}', space=vmem, size = 0x1000, scoped, tag = 'input window, operand 1, single buffered']
    #allocation6 [shape = 's32[1]{0}', space=sflag, size = 0x4, scoped, tag = 'scoped memory for tpu_custom_call.1']
    #allocation7 [shape = 'u8[12288]{0}', space=vmem, size = 0x3000, scoped, tag = 'input window, operand 2, single buffered']
    #allocation8 [shape = 'u8[4096]{0}', space=vmem, size = 0x1000, scoped, tag = 'output window, operand 0, single buffered']
    %8 = vsyncpa [#allocation3], 0
    %9 = vsyncpa [#allocation6], 0
    %10 = vsyncpa [#allocation4], 0
    // Predicated region
    $region2: #{tpu_custom_call.1} parent=1 // pred_check
      _
    $region3: #{tpu_custom_call.1} parent=1 // pred_check_branch
      %12 = sbr.rel (0) target = $region5
    $region4: #{tpu_custom_call.1} parent=1 // pred_region
      %s14 = ssub.s32 128, 128
      %15 = vsyncadd [#allocation3], %s14
      %s16 = sshll.u32 [#allocation2], 4
      %s17 = int_to_ptr.vmem [resolvable:$true] %s16
      %22 = dma.hbm_to_vmem [thread:$0]  %s0, 128, %s17, [#allocation3], 64, 64, 4
    $region5: #{tpu_custom_call.1} parent=1 // pred_fallthru
      _
    // Predicated region
    $region6: #{tpu_custom_call.1} parent=1 // pred_check
      _
    $region7: #{tpu_custom_call.1} parent=1 // pred_check_branch
      %24 = sbr.rel (0) target = $region9
    $region8: #{tpu_custom_call.1} parent=1 // pred_region
      %s26 = ssub.s32 128, 128
      %27 = vsyncadd [#allocation6], %s26
      %s28 = sshll.u32 [#allocation5], 4
      %s29 = int_to_ptr.vmem [resolvable:$true] %s28
      %34 = dma.hbm_to_vmem [thread:$0]  %s1, 128, %s29, [#allocation6], 64, 64, 4
    $region9: #{tpu_custom_call.1} parent=1 // pred_fallthru
      _
    // Predicated region
    $region10: #{tpu_custom_call.1} parent=1 // pred_check
      _
    $region11: #{tpu_custom_call.1} parent=1 // pred_check_branch
      %36 = sbr.rel (0) target = $region13
    $region12: #{tpu_custom_call.1} parent=1 // pred_region
      %s38 = ssub.s32 384, 384
      %39 = vsyncadd [#allocation6], %s38
      %s40 = sshll.u32 [#allocation7], 4
      %s41 = int_to_ptr.vmem [resolvable:$true] %s40
      %46 = dma.hbm_to_vmem [thread:$0]  %s2, 384, %s41, [#allocation6], 64, 64, 4
    $region13: #{tpu_custom_call.1} parent=1 // pred_fallthru
      _
    // Predicated region
    $region14: #{tpu_custom_call.1} parent=1 // pred_check
      _
    $region15: #{tpu_custom_call.1} parent=1 // pred_check_branch
      %48 = sbr.rel (0) target = $region17
    $region16: #{tpu_custom_call.1} parent=1 // pred_region
      %49 = dma.done [#allocation3], 128
    $region17: #{tpu_custom_call.1} parent=1 // pred_fallthru
      _
    // Predicated region
    $region18: #{tpu_custom_call.1} parent=1 // pred_check
      _
    $region19: #{tpu_custom_call.1} parent=1 // pred_check_branch
      %51 = sbr.rel (0) target = $region21
    $region20: #{tpu_custom_call.1} parent=1 // pred_region
      %52 = dma.done [#allocation6], 128
    $region21: #{tpu_custom_call.1} parent=1 // pred_fallthru
      _
    // Predicated region
    $region22: #{tpu_custom_call.1} parent=1 // pred_check
      _
    $region23: #{tpu_custom_call.1} parent=1 // pred_check_branch
      %54 = sbr.rel (0) target = $region25
    $region24: #{tpu_custom_call.1} parent=1 // pred_region
      %55 = dma.done [#allocation6], 384
    $region25: #{tpu_custom_call.1} parent=1 // pred_fallthru
      _
    %v56 = vld [vmem:[#allocation2] sm:$0xf]
    %v57 = vld [vmem:[#allocation2 + $0x4] sm:$0xf]
    %v58 = vld [vmem:[#allocation5] sm:$0xf]
    %v59 = vld [vmem:[#allocation5 + $0x4] sm:$0xf]
    %v60 = vld [vmem:[#allocation7] sm:$0x1]
    %v61 = vld [vmem:[#allocation7 + $0x4] sm:$0x1]
    %v62 = vld [vmem:[#allocation7 + $0x8] sm:$0x1]
    %v63 = vld [vmem:[#allocation7 + $0xc] sm:$0x1]
    %v64 = vld [vmem:[#allocation7 + $0x10] sm:$0x1]
    %v65 = vld [vmem:[#allocation7 + $0x14] sm:$0x1]
    %v69 = vrot.slane %v61, 7
    %vm70 = vcmask 1041409
    %v71 = vsel %vm70, %v69, %v60
    %v72 = vrot.slane %v62, 6
    %vm73 = vcmask 1042434
    %v74 = vsel %vm73, %v72, %v71
    %vm75 = vcmask 261120
    %v77 = vsel %vm75, %v56, 0
    %v79 = vsel %vm75, %v74, 0
    %81 = vmatprep.subr.mxu0 0.0
    %82 = vmatpush1.xpose.msra.mxu0 0.0
    %83 = vmatprep.subr.mxu0 0.0
    %84 = vmatpush1.xpose.msra.mxu0 0.0
    %85 = vmatprep.subr.mxu0 0.0
    %86 = vmatpush1.xpose.msra.mxu0 0.0
    %87 = vmatprep.subr.mxu0 0.0
    %88 = vmatpush1.xpose.msra.mxu0 0.0
    %89 = vmatprep.subr.mxu0 0.0
    %90 = vmatpush1.xpose.msra.mxu0 0.0
    %91 = vmatprep.subr.mxu0 0.0
    %92 = vmatpush1.xpose.msra.mxu0 0.0
    %93 = vmatprep.subr.mxu0 0.0
    %94 = vmatpush1.xpose.msra.mxu0 0.0
    %95 = vmatprep.subr.mxu0 0.0
    %96 = vmatpush1.xpose.msra.mxu0 0.0
    %97 = vmatprep.subr.mxu0 0.0
    %98 = vmatpush1.xpose.msra.mxu0 0.0
    %99 = vmatprep.subr.mxu0 0.0
    %100 = vmatpush1.xpose.msra.mxu0 0.0
    %101 = vmatprep.subr.mxu0 0.0
    %102 = vmatpush1.xpose.msra.mxu0 0.0
    %103 = vmatprep.subr.mxu0 0.0
    %104 = vmatpush1.xpose.msra.mxu0 0.0
    %105 = vmatprep.subr.mxu0 0.0
    %106 = vmatpush1.xpose.msra.mxu0 0.0
    %107 = vmatprep.subr.mxu0 0.0
    %108 = vmatpush1.xpose.msra.mxu0 0.0
    %109 = vmatprep.subr.mxu0 0.0
    %110 = vmatpush1.xpose.msra.mxu0 0.0
    %111 = vmatprep.subr.mxu0 0.0
    %112 = vmatpush1.xpose.msra.mxu0 %v79
    %113 = vmatprep.subr.mxu0 0.0
    %114 = vmatpush2.xpose.msra.mxu0 0.0
    %115 = vmatprep.subr.mxu0 0.0
    %116 = vmatpush2.xpose.msra.mxu0 0.0
    %117 = vmatprep.subr.mxu0 0.0
    %118 = vmatpush2.xpose.msra.mxu0 0.0
    %119 = vmatprep.subr.mxu0 0.0
    %120 = vmatpush2.xpose.msra.mxu0 0.0
    %121 = vmatprep.subr.mxu0 0.0
    %122 = vmatpush2.xpose.msra.mxu0 0.0
    %123 = vmatprep.subr.mxu0 0.0
    %124 = vmatpush2.xpose.msra.mxu0 0.0
    %125 = vmatprep.subr.mxu0 0.0
    %126 = vmatpush2.xpose.msra.mxu0 0.0
    %127 = vmatprep.subr.mxu0 0.0
    %128 = vmatpush2.xpose.msra.mxu0 0.0
    %129 = vmatprep.subr.mxu0 0.0
    %130 = vmatpush2.xpose.msra.mxu0 0.0
    %131 = vmatprep.subr.mxu0 0.0
    %132 = vmatpush2.xpose.msra.mxu0 0.0
    %133 = vmatprep.subr.mxu0 0.0
    %134 = vmatpush2.xpose.msra.mxu0 0.0
    %135 = vmatprep.subr.mxu0 0.0
    %136 = vmatpush2.xpose.msra.mxu0 0.0
    %137 = vmatprep.subr.mxu0 0.0
    %138 = vmatpush2.xpose.msra.mxu0 0.0
    %139 = vmatprep.subr.mxu0 0.0
    %140 = vmatpush2.xpose.msra.mxu0 0.0
    %141 = vmatprep.subr.mxu0 0.0
    %142 = vmatpush2.xpose.msra.mxu0 0.0
    %143 = vmatprep.subr.mxu0 0.0
    %144 = vmatpush2.xpose.msra.mxu0 0.0
    %145 = vmatprep.mubr.f32.mxu0 0.0
    %146 = vmatmul.mubr.f32.gmra.mxu0 %v77
    %v147 = vpop.f32.mrf.mxu0
    %v148 = vadd.f32 0.0, %v147
    %v149 = vpop.f32.mrf.mxu0
    %150 = vdwg.mxu0
    %v154 = vrot.slane %v64, 7
    %v155 = vsel %vm70, %v154, %v63
    %v156 = vrot.slane %v65, 6
    %v157 = vsel %vm73, %v156, %v155
    %v159 = vsel %vm75, %v57, 0
    %v161 = vsel %vm75, %v157, 0
    %163 = vmatprep.subr.mxu0 0.0
    %164 = vmatpush1.xpose.msra.mxu0 0.0
    %165 = vmatprep.subr.mxu0 0.0
    %166 = vmatpush1.xpose.msra.mxu0 0.0
    %167 = vmatprep.subr.mxu0 0.0
    %168 = vmatpush1.xpose.msra.mxu0 0.0
    %169 = vmatprep.subr.mxu0 0.0
    %170 = vmatpush1.xpose.msra.mxu0 0.0
    %171 = vmatprep.subr.mxu0 0.0
    %172 = vmatpush1.xpose.msra.mxu0 0.0
    %173 = vmatprep.subr.mxu0 0.0
    %174 = vmatpush1.xpose.msra.mxu0 0.0
    %175 = vmatprep.subr.mxu0 0.0
    %176 = vmatpush1.xpose.msra.mxu0 0.0
    %177 = vmatprep.subr.mxu0 0.0
    %178 = vmatpush1.xpose.msra.mxu0 0.0
    %179 = vmatprep.subr.mxu0 0.0
    %180 = vmatpush1.xpose.msra.mxu0 0.0
    %181 = vmatprep.subr.mxu0 0.0
    %182 = vmatpush1.xpose.msra.mxu0 0.0
    %183 = vmatprep.subr.mxu0 0.0
    %184 = vmatpush1.xpose.msra.mxu0 0.0
    %185 = vmatprep.subr.mxu0 0.0
    %186 = vmatpush1.xpose.msra.mxu0 0.0
    %187 = vmatprep.subr.mxu0 0.0
    %188 = vmatpush1.xpose.msra.mxu0 0.0
    %189 = vmatprep.subr.mxu0 0.0
    %190 = vmatpush1.xpose.msra.mxu0 0.0
    %191 = vmatprep.subr.mxu0 0.0
    %192 = vmatpush1.xpose.msra.mxu0 0.0
    %193 = vmatprep.subr.mxu0 0.0
    %194 = vmatpush1.xpose.msra.mxu0 %v161
    %195 = vmatprep.subr.mxu0 0.0
    %196 = vmatpush2.xpose.msra.mxu0 0.0
    %197 = vmatprep.subr.mxu0 0.0
    %198 = vmatpush2.xpose.msra.mxu0 0.0
    %199 = vmatprep.subr.mxu0 0.0
    %200 = vmatpush2.xpose.msra.mxu0 0.0
    %201 = vmatprep.subr.mxu0 0.0
    %202 = vmatpush2.xpose.msra.mxu0 0.0
    %203 = vmatprep.subr.mxu0 0.0
    %204 = vmatpush2.xpose.msra.mxu0 0.0
    %205 = vmatprep.subr.mxu0 0.0
    %206 = vmatpush2.xpose.msra.mxu0 0.0
    %207 = vmatprep.subr.mxu0 0.0
    %208 = vmatpush2.xpose.msra.mxu0 0.0
    %209 = vmatprep.subr.mxu0 0.0
    %210 = vmatpush2.xpose.msra.mxu0 0.0
    %211 = vmatprep.subr.mxu0 0.0
    %212 = vmatpush2.xpose.msra.mxu0 0.0
    %213 = vmatprep.subr.mxu0 0.0
    %214 = vmatpush2.xpose.msra.mxu0 0.0
    %215 = vmatprep.subr.mxu0 0.0
    %216 = vmatpush2.xpose.msra.mxu0 0.0
    %217 = vmatprep.subr.mxu0 0.0
    %218 = vmatpush2.xpose.msra.mxu0 0.0
    %219 = vmatprep.subr.mxu0 0.0
    %220 = vmatpush2.xpose.msra.mxu0 0.0
    %221 = vmatprep.subr.mxu0 0.0
    %222 = vmatpush2.xpose.msra.mxu0 0.0
    %223 = vmatprep.subr.mxu0 0.0
    %224 = vmatpush2.xpose.msra.mxu0 0.0
    %225 = vmatprep.subr.mxu0 0.0
    %226 = vmatpush2.xpose.msra.mxu0 0.0
    %227 = vmatprep.mubr.f32.mxu0 0.0
    %228 = vmatmul.mubr.f32.gmra.mxu0 %v159
    %v229 = vpop.f32.mrf.mxu0
    %v230 = vadd.f32 0.0, %v229
    %v231 = vpop.f32.mrf.mxu0
    %232 = vdwg.mxu0
    %v233 = vmul.f32 %v56, %v58
    %v234 = vmul.f32 %v57, %v59
    %v237 = vrot.slane %v234, 7
    %v238 = vsel %vm70, %v237, %v233
    %vm240 = vcmask 254976
    %v241 = vsel %vm240, %v238, 0.0
    %242 = vadd.xlane.f32.xlu0 %v241
    %v243 = vpop.xlane.xlu0 %242
    %v244 = vmul.f32 %v148, 5.0
    %v245 = vmul.f32 %v230, 5.0
    %v246 = vmul.f32 %v243, 5.0
    %v249 = vrot.slane %v245, 7
    %v250 = vsel %vm70, %v249, %v244
    %vm252 = vcmask 17408
    %v253 = vsel %vm252, %v250, -inf
    %254 = vmax.xlane.f32.xlu0 %v253
    %v255 = vpop.xlane.xlu0 %254
    %v256 = vmax.f32 %v255, %v246
    %v257 = vsub.f32 %v246, %v256
    %v258 = vmul.f32 %v257, 1.442695
    %v259 = vpow.pop %v258
    %v261 = vrot.slane %v256, 1
    %v264 = vsub.f32 %v244, %v256
    %v265 = vsub.f32 %v245, %v261
    %v266 = vmul.f32 %v264, 1.442695
    %v267 = vpow.pop %v266
    %v268 = vmul.f32 %v265, 1.442695
    %v269 = vpow.pop %v268
    %v272 = vrot.slane %v269, 7
    %v273 = vsel %vm70, %v272, %v267
    %v275 = vsel %vm252, %v273, 0.0
    %276 = vadd.xlane.f32.xlu0 %v275
    %v277 = vpop.xlane.xlu0 %276
    %v278 = vadd.f32 %v259, %v277
    %v279 = vlog2.pop %v278
    %v280 = vmul.f32 %v279, 0.6931472
    %v281 = vsub.f32 %v280, %v257
    %v282 = vadd.f32 %v281, 0.0
    %v283 = vld [vmem:[#allocation7 + $0x1] sm:$0x1]
    %v284 = vld [vmem:[#allocation7 + $0x5] sm:$0x1]
    %v285 = vld [vmem:[#allocation7 + $0x9] sm:$0x1]
    %v286 = vld [vmem:[#allocation7 + $0xd] sm:$0x1]
    %v287 = vld [vmem:[#allocation7 + $0x11] sm:$0x1]
    %v288 = vld [vmem:[#allocation7 + $0x15] sm:$0x1]
    %v289 = vrot.slane %v56, 1
    %v293 = vrot.slane %v284, 7
    %v294 = vsel %vm70, %v293, %v283
    %v295 = vrot.slane %v285, 6
    %v296 = vsel %vm73, %v295, %v294
    %v297 = vsel %vm75, %v289, 0
    %v299 = vsel %vm75, %v296, 0
    %301 = vmatprep.subr.mxu0 0.0
    %302 = vmatpush1.xpose.msra.mxu0 0.0
    %303 = vmatprep.subr.mxu0 0.0
    %304 = vmatpush1.xpose.msra.mxu0 0.0
    %305 = vmatprep.subr.mxu0 0.0
    %306 = vmatpush1.xpose.msra.mxu0 0.0
    %307 = vmatprep.subr.mxu0 0.0
    %308 = vmatpush1.xpose.msra.mxu0 0.0
    %309 = vmatprep.subr.mxu0 0.0
    %310 = vmatpush1.xpose.msra.mxu0 0.0
    %311 = vmatprep.subr.mxu0 0.0
    %312 = vmatpush1.xpose.msra.mxu0 0.0
    %313 = vmatprep.subr.mxu0 0.0
    %314 = vmatpush1.xpose.msra.mxu0 0.0
    %315 = vmatprep.subr.mxu0 0.0
    %316 = vmatpush1.xpose.msra.mxu0 0.0
    %317 = vmatprep.subr.mxu0 0.0
    %318 = vmatpush1.xpose.msra.mxu0 0.0
    %319 = vmatprep.subr.mxu0 0.0
    %320 = vmatpush1.xpose.msra.mxu0 0.0
    %321 = vmatprep.subr.mxu0 0.0
    %322 = vmatpush1.xpose.msra.mxu0 0.0
    %323 = vmatprep.subr.mxu0 0.0
    %324 = vmatpush1.xpose.msra.mxu0 0.0
    %325 = vmatprep.subr.mxu0 0.0
    %326 = vmatpush1.xpose.msra.mxu0 0.0
    %327 = vmatprep.subr.mxu0 0.0
    %328 = vmatpush1.xpose.msra.mxu0 0.0
    %329 = vmatprep.subr.mxu0 0.0
    %330 = vmatpush1.xpose.msra.mxu0 0.0
    %331 = vmatprep.subr.mxu0 0.0
    %332 = vmatpush1.xpose.msra.mxu0 %v299
    %333 = vmatprep.subr.mxu0 0.0
    %334 = vmatpush2.xpose.msra.mxu0 0.0
    %335 = vmatprep.subr.mxu0 0.0
    %336 = vmatpush2.xpose.msra.mxu0 0.0
    %337 = vmatprep.subr.mxu0 0.0
    %338 = vmatpush2.xpose.msra.mxu0 0.0
    %339 = vmatprep.subr.mxu0 0.0
    %340 = vmatpush2.xpose.msra.mxu0 0.0
    %341 = vmatprep.subr.mxu0 0.0
    %342 = vmatpush2.xpose.msra.mxu0 0.0
    %343 = vmatprep.subr.mxu0 0.0
    %344 = vmatpush2.xpose.msra.mxu0 0.0
    %345 = vmatprep.subr.mxu0 0.0
    %346 = vmatpush2.xpose.msra.mxu0 0.0
    %347 = vmatprep.subr.mxu0 0.0
    %348 = vmatpush2.xpose.msra.mxu0 0.0
    %349 = vmatprep.subr.mxu0 0.0
    %350 = vmatpush2.xpose.msra.mxu0 0.0
    %351 = vmatprep.subr.mxu0 0.0
    %352 = vmatpush2.xpose.msra.mxu0 0.0
    %353 = vmatprep.subr.mxu0 0.0
    %354 = vmatpush2.xpose.msra.mxu0 0.0
    %355 = vmatprep.subr.mxu0 0.0
    %356 = vmatpush2.xpose.msra.mxu0 0.0
    %357 = vmatprep.subr.mxu0 0.0
    %358 = vmatpush2.xpose.msra.mxu0 0.0
    %359 = vmatprep.subr.mxu0 0.0
    %360 = vmatpush2.xpose.msra.mxu0 0.0
    %361 = vmatprep.subr.mxu0 0.0
    %362 = vmatpush2.xpose.msra.mxu0 0.0
    %363 = vmatprep.subr.mxu0 0.0
    %364 = vmatpush2.xpose.msra.mxu0 0.0
    %365 = vmatprep.mubr.f32.mxu0 0.0
    %366 = vmatmul.mubr.f32.gmra.mxu0 %v297
    %v367 = vpop.f32.mrf.mxu0
    %v368 = vadd.f32 0.0, %v367
    %v369 = vpop.f32.mrf.mxu0
    %370 = vdwg.mxu0
    %v371 = vrot.slane %v57, 1
    %v375 = vrot.slane %v287, 7
    %v376 = vsel %vm70, %v375, %v286
    %v377 = vrot.slane %v288, 6
    %v378 = vsel %vm73, %v377, %v376
    %v379 = vsel %vm75, %v371, 0
    %v381 = vsel %vm75, %v378, 0
    %383 = vmatprep.subr.mxu0 0.0
    %384 = vmatpush1.xpose.msra.mxu0 0.0
    %385 = vmatprep.subr.mxu0 0.0
    %386 = vmatpush1.xpose.msra.mxu0 0.0
    %387 = vmatprep.subr.mxu0 0.0
    %388 = vmatpush1.xpose.msra.mxu0 0.0
    %389 = vmatprep.subr.mxu0 0.0
    %390 = vmatpush1.xpose.msra.mxu0 0.0
    %391 = vmatprep.subr.mxu0 0.0
    %392 = vmatpush1.xpose.msra.mxu0 0.0
    %393 = vmatprep.subr.mxu0 0.0
    %394 = vmatpush1.xpose.msra.mxu0 0.0
    %395 = vmatprep.subr.mxu0 0.0
    %396 = vmatpush1.xpose.msra.mxu0 0.0
    %397 = vmatprep.subr.mxu0 0.0
    %398 = vmatpush1.xpose.msra.mxu0 0.0
    %399 = vmatprep.subr.mxu0 0.0
    %400 = vmatpush1.xpose.msra.mxu0 0.0
    %401 = vmatprep.subr.mxu0 0.0
    %402 = vmatpush1.xpose.msra.mxu0 0.0
    %403 = vmatprep.subr.mxu0 0.0
    %404 = vmatpush1.xpose.msra.mxu0 0.0
    %405 = vmatprep.subr.mxu0 0.0
    %406 = vmatpush1.xpose.msra.mxu0 0.0
    %407 = vmatprep.subr.mxu0 0.0
    %408 = vmatpush1.xpose.msra.mxu0 0.0
    %409 = vmatprep.subr.mxu0 0.0
    %410 = vmatpush1.xpose.msra.mxu0 0.0
    %411 = vmatprep.subr.mxu0 0.0
    %412 = vmatpush1.xpose.msra.mxu0 0.0
    %413 = vmatprep.subr.mxu0 0.0
    %414 = vmatpush1.xpose.msra.mxu0 %v381
    %415 = vmatprep.subr.mxu0 0.0
    %416 = vmatpush2.xpose.msra.mxu0 0.0
    %417 = vmatprep.subr.mxu0 0.0
    %418 = vmatpush2.xpose.msra.mxu0 0.0
    %419 = vmatprep.subr.mxu0 0.0
    %420 = vmatpush2.xpose.msra.mxu0 0.0
    %421 = vmatprep.subr.mxu0 0.0
    %422 = vmatpush2.xpose.msra.mxu0 0.0
    %423 = vmatprep.subr.mxu0 0.0
    %424 = vmatpush2.xpose.msra.mxu0 0.0
    %425 = vmatprep.subr.mxu0 0.0
    %426 = vmatpush2.xpose.msra.mxu0 0.0
    %427 = vmatprep.subr.mxu0 0.0
    %428 = vmatpush2.xpose.msra.mxu0 0.0
    %429 = vmatprep.subr.mxu0 0.0
    %430 = vmatpush2.xpose.msra.mxu0 0.0
    %431 = vmatprep.subr.mxu0 0.0
    %432 = vmatpush2.xpose.msra.mxu0 0.0
    %433 = vmatprep.subr.mxu0 0.0
    %434 = vmatpush2.xpose.msra.mxu0 0.0
    %435 = vmatprep.subr.mxu0 0.0
    %436 = vmatpush2.xpose.msra.mxu0 0.0
    %437 = vmatprep.subr.mxu0 0.0
    %438 = vmatpush2.xpose.msra.mxu0 0.0
    %439 = vmatprep.subr.mxu0 0.0
    %440 = vmatpush2.xpose.msra.mxu0 0.0
    %441 = vmatprep.subr.mxu0 0.0
    %442 = vmatpush2.xpose.msra.mxu0 0.0
    %443 = vmatprep.subr.mxu0 0.0
    %444 = vmatpush2.xpose.msra.mxu0 0.0
    %445 = vmatprep.subr.mxu0 0.0
    %446 = vmatpush2.xpose.msra.mxu0 0.0
    %447 = vmatprep.mubr.f32.mxu0 0.0
    %448 = vmatmul.mubr.f32.gmra.mxu0 %v379
    %v449 = vpop.f32.mrf.mxu0
    %v450 = vadd.f32 0.0, %v449
    %v451 = vpop.f32.mrf.mxu0
    %452 = vdwg.mxu0
    %v453 = vsel %vm73, %v237, %v233
    %vm455 = vcmask 256001
    %v456 = vsel %vm455, %v453, 0.0
    %457 = vadd.xlane.f32.xlu0 %v456
    %v458 = vpop.xlane.xlu0 %457
    %v459 = vmul.f32 %v368, 5.0
    %v460 = vmul.f32 %v450, 5.0
    %v461 = vmul.f32 %v458, 5.0
    %v464 = vrot.slane %v460, 7
    %v465 = vsel %vm70, %v464, %v459
    %v467 = vsel %vm252, %v465, -inf
    %468 = vmax.xlane.f32.xlu0 %v467
    %v469 = vpop.xlane.xlu0 %468
    %v471 = vrot.slane %v461, 1
    %v473 = vmax.f32 %v469, %v471
    %v475 = vrot.slane %v473, 7
    %v477 = vsub.f32 %v461, %v475
    %v478 = vmul.f32 %v477, 1.442695
    %v479 = vpow.pop %v478
    %480 = vset.pattern.permute.xlu0 0
    %481 = vperm.xlu0 %480, %v473
    %v482 = vpop.permute.xlu0 %481
    %v483 = vrot.slane %v482, 1
    %v486 = vsub.f32 %v459, %v482
    %v487 = vsub.f32 %v460, %v483
    %v488 = vmul.f32 %v486, 1.442695
    %v489 = vpow.pop %v488
    %v490 = vmul.f32 %v487, 1.442695
    %v491 = vpow.pop %v490
    %v494 = vrot.slane %v491, 7
    %v495 = vsel %vm70, %v494, %v489
    %v497 = vsel %vm252, %v495, 0.0
    %498 = vadd.xlane.f32.xlu0 %v497
    %v499 = vpop.xlane.xlu0 %498
    %v501 = vrot.slane %v499, 7
    %v503 = vadd.f32 %v479, %v501
    %v504 = vlog2.pop %v503
    %v505 = vmul.f32 %v504, 0.6931472
    %v506 = vsub.f32 %v505, %v477
    %v508 = vrot.slane %v506, 1
    %v510 = vadd.f32 %v282, %v508
    %v511 = vld [vmem:[#allocation7 + $0x2] sm:$0x1]
    %v512 = vld [vmem:[#allocation7 + $0x6] sm:$0x1]
    %v513 = vld [vmem:[#allocation7 + $0xa] sm:$0x1]
    %v514 = vld [vmem:[#allocation7 + $0xe] sm:$0x1]
    %v515 = vld [vmem:[#allocation7 + $0x12] sm:$0x1]
    %v516 = vld [vmem:[#allocation7 + $0x16] sm:$0x1]
    %v517 = vrot.slane %v56, 2
    %v521 = vrot.slane %v512, 7
    %v522 = vsel %vm70, %v521, %v511
    %v523 = vrot.slane %v513, 6
    %v524 = vsel %vm73, %v523, %v522
    %v525 = vsel %vm75, %v517, 0
    %v527 = vsel %vm75, %v524, 0
    %529 = vmatprep.subr.mxu0 0.0
    %530 = vmatpush1.xpose.msra.mxu0 0.0
    %531 = vmatprep.subr.mxu0 0.0
    %532 = vmatpush1.xpose.msra.mxu0 0.0
    %533 = vmatprep.subr.mxu0 0.0
    %534 = vmatpush1.xpose.msra.mxu0 0.0
    %535 = vmatprep.subr.mxu0 0.0
    %536 = vmatpush1.xpose.msra.mxu0 0.0
    %537 = vmatprep.subr.mxu0 0.0
    %538 = vmatpush1.xpose.msra.mxu0 0.0
    %539 = vmatprep.subr.mxu0 0.0
    %540 = vmatpush1.xpose.msra.mxu0 0.0
    %541 = vmatprep.subr.mxu0 0.0
    %542 = vmatpush1.xpose.msra.mxu0 0.0
    %543 = vmatprep.subr.mxu0 0.0
    %544 = vmatpush1.xpose.msra.mxu0 0.0
    %545 = vmatprep.subr.mxu0 0.0
    %546 = vmatpush1.xpose.msra.mxu0 0.0
    %547 = vmatprep.subr.mxu0 0.0
    %548 = vmatpush1.xpose.msra.mxu0 0.0
    %549 = vmatprep.subr.mxu0 0.0
    %550 = vmatpush1.xpose.msra.mxu0 0.0
    %551 = vmatprep.subr.mxu0 0.0
    %552 = vmatpush1.xpose.msra.mxu0 0.0
    %553 = vmatprep.subr.mxu0 0.0
    %554 = vmatpush1.xpose.msra.mxu0 0.0
    %555 = vmatprep.subr.mxu0 0.0
    %556 = vmatpush1.xpose.msra.mxu0 0.0
    %557 = vmatprep.subr.mxu0 0.0
    %558 = vmatpush1.xpose.msra.mxu0 0.0
    %559 = vmatprep.subr.mxu0 0.0
    %560 = vmatpush1.xpose.msra.mxu0 %v527
    %561 = vmatprep.subr.mxu0 0.0
    %562 = vmatpush2.xpose.msra.mxu0 0.0
    %563 = vmatprep.subr.mxu0 0.0
    %564 = vmatpush2.xpose.msra.mxu0 0.0
    %565 = vmatprep.subr.mxu0 0.0
    %566 = vmatpush2.xpose.msra.mxu0 0.0
    %567 = vmatprep.subr.mxu0 0.0
    %568 = vmatpush2.xpose.msra.mxu0 0.0
    %569 = vmatprep.subr.mxu0 0.0
    %570 = vmatpush2.xpose.msra.mxu0 0.0
    %571 = vmatprep.subr.mxu0 0.0
    %572 = vmatpush2.xpose.msra.mxu0 0.0
    %573 = vmatprep.subr.mxu0 0.0
    %574 = vmatpush2.xpose.msra.mxu0 0.0
    %575 = vmatprep.subr.mxu0 0.0
    %576 = vmatpush2.xpose.msra.mxu0 0.0
    %577 = vmatprep.subr.mxu0 0.0
    %578 = vmatpush2.xpose.msra.mxu0 0.0
    %579 = vmatprep.subr.mxu0 0.0
    %580 = vmatpush2.xpose.msra.mxu0 0.0
    %581 = vmatprep.subr.mxu0 0.0
    %582 = vmatpush2.xpose.msra.mxu0 0.0
    %583 = vmatprep.subr.mxu0 0.0
    %584 = vmatpush2.xpose.msra.mxu0 0.0
    %585 = vmatprep.subr.mxu0 0.0
    %586 = vmatpush2.xpose.msra.mxu0 0.0
    %587 = vmatprep.subr.mxu0 0.0
    %588 = vmatpush2.xpose.msra.mxu0 0.0
    %589 = vmatprep.subr.mxu0 0.0
    %590 = vmatpush2.xpose.msra.mxu0 0.0
    %591 = vmatprep.subr.mxu0 0.0
    %592 = vmatpush2.xpose.msra.mxu0 0.0
    %593 = vmatprep.mubr.f32.mxu0 0.0
    %594 = vmatmul.mubr.f32.gmra.mxu0 %v525
    %v595 = vpop.f32.mrf.mxu0
    %v596 = vadd.f32 0.0, %v595
    %v597 = vpop.f32.mrf.mxu0
    %598 = vdwg.mxu0
    %v599 = vrot.slane %v57, 2
    %v603 = vrot.slane %v515, 7
    %v604 = vsel %vm70, %v603, %v514
    %v605 = vrot.slane %v516, 6
    %v606 = vsel %vm73, %v605, %v604
    %v607 = vsel %vm75, %v599, 0
    %v609 = vsel %vm75, %v606, 0
    %611 = vmatprep.subr.mxu0 0.0
    %612 = vmatpush1.xpose.msra.mxu0 0.0
    %613 = vmatprep.subr.mxu0 0.0
    %614 = vmatpush1.xpose.msra.mxu0 0.0
    %615 = vmatprep.subr.mxu0 0.0
    %616 = vmatpush1.xpose.msra.mxu0 0.0
    %617 = vmatprep.subr.mxu0 0.0
    %618 = vmatpush1.xpose.msra.mxu0 0.0
    %619 = vmatprep.subr.mxu0 0.0
    %620 = vmatpush1.xpose.msra.mxu0 0.0
    %621 = vmatprep.subr.mxu0 0.0
    %622 = vmatpush1.xpose.msra.mxu0 0.0
    %623 = vmatprep.subr.mxu0 0.0
    %624 = vmatpush1.xpose.msra.mxu0 0.0
    %625 = vmatprep.subr.mxu0 0.0
    %626 = vmatpush1.xpose.msra.mxu0 0.0
    %627 = vmatprep.subr.mxu0 0.0
    %628 = vmatpush1.xpose.msra.mxu0 0.0
    %629 = vmatprep.subr.mxu0 0.0
    %630 = vmatpush1.xpose.msra.mxu0 0.0
    %631 = vmatprep.subr.mxu0 0.0
    %632 = vmatpush1.xpose.msra.mxu0 0.0
    %633 = vmatprep.subr.mxu0 0.0
    %634 = vmatpush1.xpose.msra.mxu0 0.0
    %635 = vmatprep.subr.mxu0 0.0
    %636 = vmatpush1.xpose.msra.mxu0 0.0
    %637 = vmatprep.subr.mxu0 0.0
    %638 = vmatpush1.xpose.msra.mxu0 0.0
    %639 = vmatprep.subr.mxu0 0.0
    %640 = vmatpush1.xpose.msra.mxu0 0.0
    %641 = vmatprep.subr.mxu0 0.0
    %642 = vmatpush1.xpose.msra.mxu0 %v609
    %643 = vmatprep.subr.mxu0 0.0
    %644 = vmatpush2.xpose.msra.mxu0 0.0
    %645 = vmatprep.subr.mxu0 0.0
    %646 = vmatpush2.xpose.msra.mxu0 0.0
    %647 = vmatprep.subr.mxu0 0.0
    %648 = vmatpush2.xpose.msra.mxu0 0.0
    %649 = vmatprep.subr.mxu0 0.0
    %650 = vmatpush2.xpose.msra.mxu0 0.0
    %651 = vmatprep.subr.mxu0 0.0
    %652 = vmatpush2.xpose.msra.mxu0 0.0
    %653 = vmatprep.subr.mxu0 0.0
    %654 = vmatpush2.xpose.msra.mxu0 0.0
    %655 = vmatprep.subr.mxu0 0.0
    %656 = vmatpush2.xpose.msra.mxu0 0.0
    %657 = vmatprep.subr.mxu0 0.0
    %658 = vmatpush2.xpose.msra.mxu0 0.0
    %659 = vmatprep.subr.mxu0 0.0
    %660 = vmatpush2.xpose.msra.mxu0 0.0
    %661 = vmatprep.subr.mxu0 0.0
    %662 = vmatpush2.xpose.msra.mxu0 0.0
    %663 = vmatprep.subr.mxu0 0.0
    %664 = vmatpush2.xpose.msra.mxu0 0.0
    %665 = vmatprep.subr.mxu0 0.0
    %666 = vmatpush2.xpose.msra.mxu0 0.0
    %667 = vmatprep.subr.mxu0 0.0
    %668 = vmatpush2.xpose.msra.mxu0 0.0
    %669 = vmatprep.subr.mxu0 0.0
    %670 = vmatpush2.xpose.msra.mxu0 0.0
    %671 = vmatprep.subr.mxu0 0.0
    %672 = vmatpush2.xpose.msra.mxu0 0.0
    %673 = vmatprep.subr.mxu0 0.0
    %674 = vmatpush2.xpose.msra.mxu0 0.0
    %675 = vmatprep.mubr.f32.mxu0 0.0
    %676 = vmatmul.mubr.f32.gmra.mxu0 %v607
    %v677 = vpop.f32.mrf.mxu0
    %v678 = vadd.f32 0.0, %v677
    %v679 = vpop.f32.mrf.mxu0
    %680 = vdwg.mxu0
    %vm681 = vcmask 1043459
    %v682 = vsel %vm681, %v237, %v233
    %vm684 = vcmask 257026
    %v685 = vsel %vm684, %v682, 0.0
    %686 = vadd.xlane.f32.xlu0 %v685
    %v687 = vpop.xlane.xlu0 %686
    %v688 = vmul.f32 %v596, 5.0
    %v689 = vmul.f32 %v678, 5.0
    %v690 = vmul.f32 %v687, 5.0
    %v693 = vrot.slane %v689, 7
    %v694 = vsel %vm70, %v693, %v688
    %v696 = vsel %vm252, %v694, -inf
    %697 = vmax.xlane.f32.xlu0 %v696
    %v698 = vpop.xlane.xlu0 %697
    %v700 = vrot.slane %v690, 2
    %v702 = vmax.f32 %v698, %v700
    %v704 = vrot.slane %v702, 6
    %v706 = vsub.f32 %v690, %v704
    %v707 = vmul.f32 %v706, 1.442695
    %v708 = vpow.pop %v707
    %709 = vset.pattern.permute.xlu0 0
    %710 = vperm.xlu0 %709, %v702
    %v711 = vpop.permute.xlu0 %710
    %v712 = vrot.slane %v711, 1
    %v715 = vsub.f32 %v688, %v711
    %v716 = vsub.f32 %v689, %v712
    %v717 = vmul.f32 %v715, 1.442695
    %v718 = vpow.pop %v717
    %v719 = vmul.f32 %v716, 1.442695
    %v720 = vpow.pop %v719
    %v723 = vrot.slane %v720, 7
    %v724 = vsel %vm70, %v723, %v718
    %v726 = vsel %vm252, %v724, 0.0
    %727 = vadd.xlane.f32.xlu0 %v726
    %v728 = vpop.xlane.xlu0 %727
    %v730 = vrot.slane %v728, 6
    %v732 = vadd.f32 %v708, %v730
    %v733 = vlog2.pop %v732
    %v734 = vmul.f32 %v733, 0.6931472
    %v735 = vsub.f32 %v734, %v706
    %v737 = vrot.slane %v735, 2
    %v739 = vadd.f32 %v510, %v737
    %v740 = vld [vmem:[#allocation7 + $0x3] sm:$0x1]
    %v741 = vld [vmem:[#allocation7 + $0x7] sm:$0x1]
    %v742 = vld [vmem:[#allocation7 + $0xb] sm:$0x1]
    %v743 = vld [vmem:[#allocation7 + $0xf] sm:$0x1]
    %v744 = vld [vmem:[#allocation7 + $0x13] sm:$0x1]
    %v745 = vld [vmem:[#allocation7 + $0x17] sm:$0x1]
    %v746 = vrot.slane %v56, 3
    %v750 = vrot.slane %v741, 7
    %v751 = vsel %vm70, %v750, %v740
    %v752 = vrot.slane %v742, 6
    %v753 = vsel %vm73, %v752, %v751
    %v754 = vsel %vm75, %v746, 0
    %v756 = vsel %vm75, %v753, 0
    %758 = vmatprep.subr.mxu0 0.0
    %759 = vmatpush1.xpose.msra.mxu0 0.0
    %760 = vmatprep.subr.mxu0 0.0
    %761 = vmatpush1.xpose.msra.mxu0 0.0
    %762 = vmatprep.subr.mxu0 0.0
    %763 = vmatpush1.xpose.msra.mxu0 0.0
    %764 = vmatprep.subr.mxu0 0.0
    %765 = vmatpush1.xpose.msra.mxu0 0.0
    %766 = vmatprep.subr.mxu0 0.0
    %767 = vmatpush1.xpose.msra.mxu0 0.0
    %768 = vmatprep.subr.mxu0 0.0
    %769 = vmatpush1.xpose.msra.mxu0 0.0
    %770 = vmatprep.subr.mxu0 0.0
    %771 = vmatpush1.xpose.msra.mxu0 0.0
    %772 = vmatprep.subr.mxu0 0.0
    %773 = vmatpush1.xpose.msra.mxu0 0.0
    %774 = vmatprep.subr.mxu0 0.0
    %775 = vmatpush1.xpose.msra.mxu0 0.0
    %776 = vmatprep.subr.mxu0 0.0
    %777 = vmatpush1.xpose.msra.mxu0 0.0
    %778 = vmatprep.subr.mxu0 0.0
    %779 = vmatpush1.xpose.msra.mxu0 0.0
    %780 = vmatprep.subr.mxu0 0.0
    %781 = vmatpush1.xpose.msra.mxu0 0.0
    %782 = vmatprep.subr.mxu0 0.0
    %783 = vmatpush1.xpose.msra.mxu0 0.0
    %784 = vmatprep.subr.mxu0 0.0
    %785 = vmatpush1.xpose.msra.mxu0 0.0
    %786 = vmatprep.subr.mxu0 0.0
    %787 = vmatpush1.xpose.msra.mxu0 0.0
    %788 = vmatprep.subr.mxu0 0.0
    %789 = vmatpush1.xpose.msra.mxu0 %v756
    %790 = vmatprep.subr.mxu0 0.0
    %791 = vmatpush2.xpose.msra.mxu0 0.0
    %792 = vmatprep.subr.mxu0 0.0
    %793 = vmatpush2.xpose.msra.mxu0 0.0
    %794 = vmatprep.subr.mxu0 0.0
    %795 = vmatpush2.xpose.msra.mxu0 0.0
    %796 = vmatprep.subr.mxu0 0.0
    %797 = vmatpush2.xpose.msra.mxu0 0.0
    %798 = vmatprep.subr.mxu0 0.0
    %799 = vmatpush2.xpose.msra.mxu0 0.0
    %800 = vmatprep.subr.mxu0 0.0
    %801 = vmatpush2.xpose.msra.mxu0 0.0
    %802 = vmatprep.subr.mxu0 0.0
    %803 = vmatpush2.xpose.msra.mxu0 0.0
    %804 = vmatprep.subr.mxu0 0.0
    %805 = vmatpush2.xpose.msra.mxu0 0.0
    %806 = vmatprep.subr.mxu0 0.0
    %807 = vmatpush2.xpose.msra.mxu0 0.0
    %808 = vmatprep.subr.mxu0 0.0
    %809 = vmatpush2.xpose.msra.mxu0 0.0
    %810 = vmatprep.subr.mxu0 0.0
    %811 = vmatpush2.xpose.msra.mxu0 0.0
    %812 = vmatprep.subr.mxu0 0.0
    %813 = vmatpush2.xpose.msra.mxu0 0.0
    %814 = vmatprep.subr.mxu0 0.0
    %815 = vmatpush2.xpose.msra.mxu0 0.0
    %816 = vmatprep.subr.mxu0 0.0
    %817 = vmatpush2.xpose.msra.mxu0 0.0
    %818 = vmatprep.subr.mxu0 0.0
    %819 = vmatpush2.xpose.msra.mxu0 0.0
    %820 = vmatprep.subr.mxu0 0.0
    %821 = vmatpush2.xpose.msra.mxu0 0.0
    %822 = vmatprep.mubr.f32.mxu0 0.0
    %823 = vmatmul.mubr.f32.gmra.mxu0 %v754
    %v824 = vpop.f32.mrf.mxu0
    %v825 = vadd.f32 0.0, %v824
    %v826 = vpop.f32.mrf.mxu0
    %827 = vdwg.mxu0
    %v828 = vrot.slane %v57, 3
    %v832 = vrot.slane %v744, 7
    %v833 = vsel %vm70, %v832, %v743
    %v834 = vrot.slane %v745, 6
    %v835 = vsel %vm73, %v834, %v833
    %v836 = vsel %vm75, %v828, 0
    %v838 = vsel %vm75, %v835, 0
    %840 = vmatprep.subr.mxu0 0.0
    %841 = vmatpush1.xpose.msra.mxu0 0.0
    %842 = vmatprep.subr.mxu0 0.0
    %843 = vmatpush1.xpose.msra.mxu0 0.0
    %844 = vmatprep.subr.mxu0 0.0
    %845 = vmatpush1.xpose.msra.mxu0 0.0
    %846 = vmatprep.subr.mxu0 0.0
    %847 = vmatpush1.xpose.msra.mxu0 0.0
    %848 = vmatprep.subr.mxu0 0.0
    %849 = vmatpush1.xpose.msra.mxu0 0.0
    %850 = vmatprep.subr.mxu0 0.0
    %851 = vmatpush1.xpose.msra.mxu0 0.0
    %852 = vmatprep.subr.mxu0 0.0
    %853 = vmatpush1.xpose.msra.mxu0 0.0
    %854 = vmatprep.subr.mxu0 0.0
    %855 = vmatpush1.xpose.msra.mxu0 0.0
    %856 = vmatprep.subr.mxu0 0.0
    %857 = vmatpush1.xpose.msra.mxu0 0.0
    %858 = vmatprep.subr.mxu0 0.0
    %859 = vmatpush1.xpose.msra.mxu0 0.0
    %860 = vmatprep.subr.mxu0 0.0
    %861 = vmatpush1.xpose.msra.mxu0 0.0
    %862 = vmatprep.subr.mxu0 0.0
    %863 = vmatpush1.xpose.msra.mxu0 0.0
    %864 = vmatprep.subr.mxu0 0.0
    %865 = vmatpush1.xpose.msra.mxu0 0.0
    %866 = vmatprep.subr.mxu0 0.0
    %867 = vmatpush1.xpose.msra.mxu0 0.0
    %868 = vmatprep.subr.mxu0 0.0
    %869 = vmatpush1.xpose.msra.mxu0 0.0
    %870 = vmatprep.subr.mxu0 0.0
    %871 = vmatpush1.xpose.msra.mxu0 %v838
    %872 = vmatprep.subr.mxu0 0.0
    %873 = vmatpush2.xpose.msra.mxu0 0.0
    %874 = vmatprep.subr.mxu0 0.0
    %875 = vmatpush2.xpose.msra.mxu0 0.0
    %876 = vmatprep.subr.mxu0 0.0
    %877 = vmatpush2.xpose.msra.mxu0 0.0
    %878 = vmatprep.subr.mxu0 0.0
    %879 = vmatpush2.xpose.msra.mxu0 0.0
    %880 = vmatprep.subr.mxu0 0.0
    %881 = vmatpush2.xpose.msra.mxu0 0.0
    %882 = vmatprep.subr.mxu0 0.0
    %883 = vmatpush2.xpose.msra.mxu0 0.0
    %884 = vmatprep.subr.mxu0 0.0
    %885 = vmatpush2.xpose.msra.mxu0 0.0
    %886 = vmatprep.subr.mxu0 0.0
    %887 = vmatpush2.xpose.msra.mxu0 0.0
    %888 = vmatprep.subr.mxu0 0.0
    %889 = vmatpush2.xpose.msra.mxu0 0.0
    %890 = vmatprep.subr.mxu0 0.0
    %891 = vmatpush2.xpose.msra.mxu0 0.0
    %892 = vmatprep.subr.mxu0 0.0
    %893 = vmatpush2.xpose.msra.mxu0 0.0
    %894 = vmatprep.subr.mxu0 0.0
    %895 = vmatpush2.xpose.msra.mxu0 0.0
    %896 = vmatprep.subr.mxu0 0.0
    %897 = vmatpush2.xpose.msra.mxu0 0.0
    %898 = vmatprep.subr.mxu0 0.0
    %899 = vmatpush2.xpose.msra.mxu0 0.0
    %900 = vmatprep.subr.mxu0 0.0
    %901 = vmatpush2.xpose.msra.mxu0 0.0
    %902 = vmatprep.subr.mxu0 0.0
    %903 = vmatpush2.xpose.msra.mxu0 0.0
    %904 = vmatprep.mubr.f32.mxu0 0.0
    %905 = vmatmul.mubr.f32.gmra.mxu0 %v836
    %v906 = vpop.f32.mrf.mxu0
    %v907 = vadd.f32 0.0, %v906
    %v908 = vpop.f32.mrf.mxu0
    %909 = vdwg.mxu0
    %vm910 = vcmask 1044484
    %v911 = vsel %vm910, %v237, %v233
    %vm913 = vcmask 258051
    %v914 = vsel %vm913, %v911, 0.0
    %915 = vadd.xlane.f32.xlu0 %v914
    %v916 = vpop.xlane.xlu0 %915
    %v917 = vmul.f32 %v825, 5.0
    %v918 = vmul.f32 %v907, 5.0
    %v919 = vmul.f32 %v916, 5.0
    %v922 = vrot.slane %v918, 7
    %v923 = vsel %vm70, %v922, %v917
    %v925 = vsel %vm252, %v923, -inf
    %926 = vmax.xlane.f32.xlu0 %v925
    %v927 = vpop.xlane.xlu0 %926
    %v929 = vrot.slane %v919, 3
    %v931 = vmax.f32 %v927, %v929
    %v933 = vrot.slane %v931, 5
    %v935 = vsub.f32 %v919, %v933
    %v936 = vmul.f32 %v935, 1.442695
    %v937 = vpow.pop %v936
    %938 = vset.pattern.permute.xlu0 0
    %939 = vperm.xlu0 %938, %v931
    %v940 = vpop.permute.xlu0 %939
    %v941 = vrot.slane %v940, 1
    %v944 = vsub.f32 %v917, %v940
    %v945 = vsub.f32 %v918, %v941
    %v946 = vmul.f32 %v944, 1.442695
    %v947 = vpow.pop %v946
    %v948 = vmul.f32 %v945, 1.442695
    %v949 = vpow.pop %v948
    %v952 = vrot.slane %v949, 7
    %v953 = vsel %vm70, %v952, %v947
    %v955 = vsel %vm252, %v953, 0.0
    %956 = vadd.xlane.f32.xlu0 %v955
    %v957 = vpop.xlane.xlu0 %956
    %v959 = vrot.slane %v957, 5
    %v961 = vadd.f32 %v937, %v959
    %v962 = vlog2.pop %v961
    %v963 = vmul.f32 %v962, 0.6931472
    %v964 = vsub.f32 %v963, %v935
    %v966 = vrot.slane %v964, 3
    %v968 = vadd.f32 %v739, %v966
    %s969 = smul.u32 0, 2
    %v970 = vlaneseq
    %v971 = vshrl.u32 %v970, 7
    %v972 = vstv %s969
    %v973 = vadd.s32 %v972, %v971
    %vm974 = vcmp.lt.s32.totalorder %v973, 2
    %v975 = vsel %vm974, %v968, 0.0
    %vm976 = vcmask 1024
    %v977 = vsel %vm976, %v975, 0.0
    %978 = vadd.xlane.f32.xlu0 %v977
    %v979 = vpop.xlane.xlu0 %978
    %v980 = vrot.slane %v979, 4
    %v981 = vadd.f32 %v979, %v980
    %v982 = vrot.slane %v981, 2
    %v983 = vadd.f32 %v981, %v982
    %v984 = vrot.slane %v983, 1
    %v985 = vadd.f32 %v983, %v984
    %s986 = vtos %v985
    %v987 = vstv %s986
    %988 = vst [vmem:[#allocation8] sm:$0xff] %v987
    // Predicated region
    $region26: #{tpu_custom_call.1} parent=1 // pred_check
      _
    $region27: #{tpu_custom_call.1} parent=1 // pred_check_branch
      %990 = sbr.rel (0) target = $region29
    $region28: #{tpu_custom_call.1} parent=1 // pred_region
      %s992 = ssub.s32 128, 128
      %993 = vsyncadd [#allocation4], %s992
      %s995 = sshll.u32 [#allocation8], 4
      %s996 = int_to_ptr.vmem [resolvable:$true] %s995
      %998 = dma.vmem_to_hbm [thread:$0]  %s996, 128, %s3, [#allocation4]
    $region29: #{tpu_custom_call.1} parent=1 // pred_fallthru
      _
    // Predicated region
    $region30: #{tpu_custom_call.1} parent=1 // pred_check
      _
    $region31: #{tpu_custom_call.1} parent=1 // pred_check_branch
      %1000 = sbr.rel (0) target = $region33
    $region32: #{tpu_custom_call.1} parent=1 // pred_region
      %1001 = dma.done [#allocation4], 128
    $region33: #{tpu_custom_call.1} parent=1 // pred_fallthru
      _
    %1002 = vsyncpa [#allocation3], 1
    %1003 = vsyncpa [#allocation6], 1
    %1004 = vsyncpa [#allocation4], 1

</llo_original>
